<compile_context>
chip_gen: v6e
topology: v6e:2x2x1
jax: 0.10.0
libtpu: 0.0.40
codegen_flags: <defaults>
</compile_context>

<pallas_src>
import jax
import jax.numpy as jnp
from jax.experimental import pallas as pl
from jax.experimental.pallas import tpu as pltpu


def _lffd_branch_kernel(x_ref, w1_ref, b1_ref, w2_ref, b2_ref, o_ref):
    # x_ref : (C_in, TM)   pixel tile (channels on sublanes, pixels on lanes)
    # w1_ref: (C_in, C_in)  conv1 weight (out, in)
    # b1_ref: (C_in, 1)
    # w2_ref: (C_out, C_in) conv2 weight (out, in)
    # b2_ref: (C_out, 1)
    # o_ref : (C_out, TM)
    x = x_ref[...]  # native dtype; f32 accumulation via preferred_element_type

    # conv1 (1x1) + bias + ReLU
    h = jnp.dot(w1_ref[...], x, preferred_element_type=jnp.float32) + b1_ref[...]
    h = jnp.maximum(h, 0.0)

    # conv2 (1x1) + bias, no activation
    z = jnp.dot(w2_ref[...], h, preferred_element_type=jnp.float32) + b2_ref[...]
    o_ref[...] = z.astype(o_ref.dtype)


def lffd_detection_branch(x_nchw, w1, b1, w2, b2, *, tile_m=512):
    """x_nchw: (N, C_in, H, W); w1: (C_in, C_in, 1, 1); b1: (C_in,);
    w2: (C_out, C_in, 1, 1); b2: (C_out,)."""
    N, C_in, H, W = x_nchw.shape
    C_out = w2.shape[0]
    HW = H * W

    # Pixel-tile size: multiple of 128 lanes, no larger than the padded row.
    tile_m = max(128, (min(int(tile_m), pl.cdiv(HW, 128) * 128) // 128) * 128)
    HW_pad = pl.cdiv(HW, tile_m) * tile_m

    # NCHW -> (N, C_in, HW): pure reshape, no transpose / extra HBM pass.
    x3 = x_nchw.reshape(N, C_in, HW)
    if HW_pad != HW:
        # Padded pixels are independent columns; sliced off after the call.
        x3 = jnp.pad(x3, ((0, 0), (0, 0), (0, HW_pad - HW)))

    # Conv weights (out, in, 1, 1) -> (out, in); biases -> column vectors.
    w1m = w1.reshape(C_in, C_in)
    w2m = w2.reshape(C_out, C_in)
    b1c = b1.reshape(C_in, 1).astype(jnp.float32)
    b2c = b2.reshape(C_out, 1).astype(jnp.float32)

    grid = (N, HW_pad // tile_m)
    itemsize = jnp.dtype(x_nchw.dtype).itemsize
    m_total = N * HW_pad

    cost = pl.CostEstimate(
        flops=2 * m_total * (C_in * C_in + C_in * C_out),
        transcendentals=0,
        bytes_accessed=(m_total * (C_in + C_out)
                        + C_in * C_in + C_in * C_out) * itemsize
                       + (C_in + C_out) * 4,
    )

    # VMEM budget: double-buffered in/out pixel tiles + resident (tiny) params,
    # with headroom; keeps us under the 64 MiB physical VMEM of v7x.
    vmem_need = (2 * tile_m * (C_in + C_out) * max(itemsize, 4)
                 + 2 * (C_in * C_in + C_in * C_out) * itemsize
                 + 2 * (C_in + C_out) * 4)
    vmem_limit = int(min(48 * 1024 * 1024, max(16 * 1024 * 1024, 4 * vmem_need)))

    out3 = pl.pallas_call(
        _lffd_branch_kernel,
        out_shape=jax.ShapeDtypeStruct((N, C_out, HW_pad), x_nchw.dtype),
        grid_spec=pltpu.PrefetchScalarGridSpec(
            num_scalar_prefetch=0,
            grid=grid,
            in_specs=[
                pl.BlockSpec((None, C_in, tile_m), lambda n, i: (n, 0, i)),  # x tile
                pl.BlockSpec((C_in, C_in), lambda n, i: (0, 0)),             # W1
                pl.BlockSpec((C_in, 1), lambda n, i: (0, 0)),                # b1
                pl.BlockSpec((C_out, C_in), lambda n, i: (0, 0)),            # W2
                pl.BlockSpec((C_out, 1), lambda n, i: (0, 0)),               # b2
            ],
            out_specs=pl.BlockSpec((None, C_out, tile_m), lambda n, i: (n, 0, i)),
        ),
        compiler_params=pltpu.CompilerParams(
            dimension_semantics=("parallel", "parallel"),
            vmem_limit_bytes=vmem_limit,
        ),
        cost_estimate=cost,
    )(x3, w1m, b1c, w2m, b2c)

    if HW_pad != HW:
        out3 = out3[:, :, :HW]
    return out3.reshape(N, C_out, H, W)


def _reference(x_nchw, w1, b1, w2, b2):
    # Pure-JAX reference of the same math (1x1 conv == channel matmul).
    N, C_in, H, W = x_nchw.shape
    C_out = w2.shape[0]
    xf = x_nchw.astype(jnp.float32).reshape(N, C_in, H * W)
    W1 = w1.reshape(C_in, C_in).astype(jnp.float32)
    W2 = w2.reshape(C_out, C_in).astype(jnp.float32)
    h = jnp.maximum(jnp.einsum("oc,ncm->nom", W1, xf) + b1[None, :, None], 0.0)
    z = jnp.einsum("oc,ncm->nom", W2, h) + b2[None, :, None]
    return z.reshape(N, C_out, H, W).astype(x_nchw.dtype)


if __name__ == "__main__":
    key = jax.random.PRNGKey(0)
    k_x, k_w1, k_b1, k_w2, k_b2 = jax.random.split(key, 5)

    N, C_in, C_out, H, W = 2, 4, 8, 16, 16   # HW = 256 -> one 256-lane tile per image

    x = jax.random.normal(k_x, (N, C_in, H, W), dtype=jnp.float32)
    # PyTorch conv weight layout: (out, in, 1, 1)
    w1 = jax.random.normal(k_w1, (C_in, C_in, 1, 1), dtype=jnp.float32) * 0.1
    b1 = jax.random.normal(k_b1, (C_in,), dtype=jnp.float32) * 0.1
    w2 = jax.random.normal(k_w2, (C_out, C_in, 1, 1), dtype=jnp.float32) * 0.1
    b2 = jax.random.normal(k_b2, (C_out,), dtype=jnp.float32) * 0.1

    out = lffd_detection_branch(x, w1, b1, w2, b2)
    out = jax.block_until_ready(out)

    ref = _reference(x, w1, b1, w2, b2)
    assert out.shape == (N, C_out, H, W), out.shape
    assert jnp.allclose(out, ref, atol=1e-5, rtol=1e-5), "mismatch vs reference"

    print("KERNEL_OK")
</pallas_src>

<mosaic_0001>
module attributes {stable_mosaic.version = 11 : i64} {
  func.func @_lffd_branch_kernel(%arg0: i32, %arg1: i32, %arg2: memref<1x4x256xf32, #tpu.memory_space<vmem>>, %arg3: memref<4x4xf32, #tpu.memory_space<vmem>>, %arg4: memref<4x1xf32, #tpu.memory_space<vmem>>, %arg5: memref<8x4xf32, #tpu.memory_space<vmem>>, %arg6: memref<8x1xf32, #tpu.memory_space<vmem>>, %arg7: memref<1x8x256xf32, #tpu.memory_space<vmem>>) attributes {dimension_semantics = [#tpu.dimension_semantics<parallel>, #tpu.dimension_semantics<parallel>], iteration_bounds = array<i64: 2, 1>, scalar_prefetch = 0 : i64, scratch_operands = 0 : i64, tpu.core_type = #tpu.core_type<tc>, window_params = [{transform_indices = @transform_0, window_bounds = array<i64: 1, 4, 256>}, {pipeline_mode = #tpu.pipeline_mode<synchronous>, transform_indices = @transform_1, window_bounds = array<i64: 4, 4>}, {pipeline_mode = #tpu.pipeline_mode<synchronous>, transform_indices = @transform_2, window_bounds = array<i64: 4, 1>}, {pipeline_mode = #tpu.pipeline_mode<synchronous>, transform_indices = @transform_3, window_bounds = array<i64: 8, 4>}, {pipeline_mode = #tpu.pipeline_mode<synchronous>, transform_indices = @transform_4, window_bounds = array<i64: 8, 1>}, {transform_indices = @transform_5, window_bounds = array<i64: 1, 8, 256>}]} {
    %c0 = arith.constant 0 : index
    %c0_0 = arith.constant 0 : index
    %c0_1 = arith.constant 0 : index
    %0 = vector.load %arg2[%c0, %c0_0, %c0_1] : memref<1x4x256xf32, #tpu.memory_space<vmem>>, vector<1x4x256xf32>
    %1 = vector.shape_cast %0 : vector<1x4x256xf32> to vector<4x256xf32>
    %c0_2 = arith.constant 0 : index
    %c0_3 = arith.constant 0 : index
    %2 = vector.load %arg3[%c0_2, %c0_3] : memref<4x4xf32, #tpu.memory_space<vmem>>, vector<4x4xf32>
    %cst = arith.constant dense<0.000000e+00> : vector<4x256xf32>
    %3 = tpu.matmul %2, %1, %cst {dimension_numbers = #tpu.dot_dimension_numbers<[1], [0], [0], [1], [0, 0, 1, 1], [], []>} : vector<4x4xf32>, vector<4x256xf32>, vector<4x256xf32> -> vector<4x256xf32>
    %c0_4 = arith.constant 0 : index
    %c0_5 = arith.constant 0 : index
    %4 = vector.load %arg4[%c0_4, %c0_5] : memref<4x1xf32, #tpu.memory_space<vmem>>, vector<4x1xf32>
    %5 = vector.broadcast %4 : vector<4x1xf32> to vector<4x256xf32>
    %6 = arith.addf %3, %5 : vector<4x256xf32>
    %cst_6 = arith.constant 0.000000e+00 : f32
    %7 = vector.broadcast %cst_6 : f32 to vector<4x256xf32>
    %8 = arith.maximumf %6, %7 : vector<4x256xf32>
    %c0_7 = arith.constant 0 : index
    %c0_8 = arith.constant 0 : index
    %9 = vector.load %arg5[%c0_7, %c0_8] : memref<8x4xf32, #tpu.memory_space<vmem>>, vector<8x4xf32>
    %cst_9 = arith.constant dense<0.000000e+00> : vector<8x256xf32>
    %10 = tpu.matmul %9, %8, %cst_9 {dimension_numbers = #tpu.dot_dimension_numbers<[1], [0], [0], [1], [0, 0, 1, 1], [], []>} : vector<8x4xf32>, vector<4x256xf32>, vector<8x256xf32> -> vector<8x256xf32>
    %c0_10 = arith.constant 0 : index
    %c0_11 = arith.constant 0 : index
    %11 = vector.load %arg6[%c0_10, %c0_11] : memref<8x1xf32, #tpu.memory_space<vmem>>, vector<8x1xf32>
    %12 = vector.broadcast %11 : vector<8x1xf32> to vector<8x256xf32>
    %13 = arith.addf %10, %12 : vector<8x256xf32>
    %c0_12 = arith.constant 0 : index
    %c0_13 = arith.constant 0 : index
    %c0_14 = arith.constant 0 : index
    %14 = vector.load %arg7[%c0_12, %c0_13, %c0_14] : memref<1x8x256xf32, #tpu.memory_space<vmem>>, vector<1x8x256xf32>
    %15 = vector.shape_cast %14 : vector<1x8x256xf32> to vector<8x256xf32>
    %16 = vector.shape_cast %13 : vector<8x256xf32> to vector<1x8x256xf32>
    tpu.vector_store %arg7[%c0_12, %c0_13, %c0_14], %16 {strides = array<i32>} : memref<1x8x256xf32, #tpu.memory_space<vmem>>, vector<1x8x256xf32>,
    return
  }
  func.func @transform_0(%arg0: i32, %arg1: i32) -> (i32, i32, i32) {
    %c0_i32 = arith.constant 0 : i32
    %c0_i32_0 = arith.constant 0 : i32
    return %arg0, %c0_i32, %arg1 : i32, i32, i32
  }
  func.func @transform_1(%arg0: i32, %arg1: i32) -> (i32, i32) {
    %c0_i32 = arith.constant 0 : i32
    %c0_i32_0 = arith.constant 0 : i32
    %c0_i32_1 = arith.constant 0 : i32
    return %c0_i32, %c0_i32_0 : i32, i32
  }
  func.func @transform_2(%arg0: i32, %arg1: i32) -> (i32, i32) {
    %c0_i32 = arith.constant 0 : i32
    %c0_i32_0 = arith.constant 0 : i32
    %c0_i32_1 = arith.constant 0 : i32
    return %c0_i32, %c0_i32_0 : i32, i32
  }
  func.func @transform_3(%arg0: i32, %arg1: i32) -> (i32, i32) {
    %c0_i32 = arith.constant 0 : i32
    %c0_i32_0 = arith.constant 0 : i32
    %c0_i32_1 = arith.constant 0 : i32
    return %c0_i32, %c0_i32_0 : i32, i32
  }
  func.func @transform_4(%arg0: i32, %arg1: i32) -> (i32, i32) {
    %c0_i32 = arith.constant 0 : i32
    %c0_i32_0 = arith.constant 0 : i32
    %c0_i32_1 = arith.constant 0 : i32
    return %c0_i32, %c0_i32_0 : i32, i32
  }
  func.func @transform_5(%arg0: i32, %arg1: i32) -> (i32, i32, i32) {
    %c0_i32 = arith.constant 0 : i32
    %c0_i32_0 = arith.constant 0 : i32
    return %arg0, %c0_i32, %arg1 : i32, i32, i32
  }
}

</mosaic_0001>

<llo_original>
// kernel: tpu_custom_call.1
$region0: #{tpu_custom_call.1}
  #allocation0 [shape = 'u32[]', space=smem, size = 0x4, offset = 0x4, fixed_abs, tag = 'smem constant byte address 0x4 - core index']
  #allocation1 [shape = 'u32[144,128]{1,0:T(1,128)}', space=vmem, size = 0x12000, scoped, tag = 'internal scratch']
  %s0 = inlined_call_operand.vmem [shape: f32[2,4,256], index: 0, kind: input, shape index: {}]
  %s1 = inlined_call_operand.vmem [shape: f32[4,4], index: 1, kind: input, shape index: {}]
  %s2 = inlined_call_operand.vmem [shape: f32[4,1], index: 2, kind: input, shape index: {}]
  %s3 = inlined_call_operand.vmem [shape: f32[8,4], index: 3, kind: input, shape index: {}]
  %s4 = inlined_call_operand.vmem [shape: f32[8,1], index: 4, kind: input, shape index: {}]
  %s5 = inlined_call_operand.hbm [shape: f32[2,8,256], index: 5, kind: output, shape index: {}]
  %s6 = sld [smem:[#allocation0]]
  $region53: #{tpu_custom_call.1} parent=0
    _
  %s8 = ssub.s32 1, %s6
  %s9 = scalar_select 0, %s8, %s6
  $region1: #{tpu_custom_call.1} parent=0
    #allocation2 [shape = 'u8[16384]{0}', space=vmem, size = 0x4000, scoped, tag = 'output window, operand 0']
    #allocation3 [shape = 's32[2]{0}', space=sflag, size = 0x8, scoped, tag = 'scoped memory for tpu_custom_call.1']
    %10 = vsyncpa [#allocation3], 0
    %s11 = scalar_lea.sflag [#allocation3], 1
    %12 = vsyncpa %s11, 0
    loop: start=0, step=1, limit=4
    $region2: #{tpu_custom_call.1} parent=1 // loop_pre_header
      _
    $region3: #{tpu_custom_call.1} parent=1 // loop_header
      %s14 = sphi 0, %s18
      %p15 = scmp.ge.s32.totalorder %s14, 4
      %s21 = sphi 0, %s33
      %s22 = sphi 0, %s29
      %s23 = sphi 0, %s21
      %s24 = sphi 0, %s22
      %s25 = sphi 0, %s23
      %s26 = sphi 0, %s24
      %s38 = sphi 0, %s40
      %s41 = sphi 0, %s38
      %s42 = sphi 0, %s41
      %s58 = sphi 0, %s42
      %s62 = sphi 0, %s62
      %s64 = sphi 0, %s62
      %s65 = sphi 0, %s64
      %s79 = sphi 0, %s65
      %s83 = sphi 0, %s83
      %s85 = sphi 0, %s83
      %s86 = sphi 0, %s85
      %s100 = sphi 0, %s86
      %s104 = sphi 0, %s104
      %s106 = sphi 0, %s104
      %s107 = sphi 0, %s106
      %s121 = sphi 0, %s107
      %s125 = sphi 0, %s125
      %s127 = sphi 0, %s125
      %s128 = sphi 0, %s127
      %s142 = sphi 0, %s128
      %s150 = sphi 0, %s152
      %s153 = sphi 0, %s150
      %s154 = sphi 0, %s153
      %s170 = sphi 0, %s154
    $region4: #{tpu_custom_call.1} parent=1 // loop_header_branch
      %17 = sbr.rel (%p15) target = $region8
    $region5: #{tpu_custom_call.1} parent=1 // loop_body
      %s19 = ssub.s32 %s14, 1
      %s20 = ssub.s32 %s14, 2
      %s27 = sadd.s32 1, %s22
      %p28 = scmp.ge.s32.totalorder %s27, 1
      %s29 = scalar_select %p28, 0, %s27
      %s30 = sadd.s32 1, %s21
      %s31 = scalar_select %p28, %s30, %s21
      %p32 = scmp.ge.s32.totalorder %s31, 2
      %s33 = scalar_select %p32, 0, %s31
      %s34 = ssub.s32 %s21, %s33
      %s35 = ssub.s32 %s22, %s29
      %s36 = sor.u32 %s34, %s35
      %p37 = scmp.eq.s32.totalorder %s36, 0
      %s39 = sadd.s32 %s38, 1
      %s40 = scalar_select %p37, %s38, %s39
      %p43 = pneg %p37
      %p44 = scmp.eq.s32.totalorder %s14, 1
      %p45 = por %p43, %p44
      %p46 = scmp.ne.s32.totalorder %s38, %s41
      %p47 = scmp.eq.s32.totalorder %s14, 0
      %p48 = por %p46, %p47
      %p49 = scmp.ne.s32.totalorder %s38, %s41
      %p50 = scmp.eq.s32.totalorder %s19, 1
      %p51 = por %p49, %p50
      %p52 = scmp.ne.s32.totalorder %s41, %s42
      %p53 = scmp.eq.s32.totalorder %s19, 0
      %p54 = por %p52, %p53
      %p55 = scmp.ne.s32.totalorder %s41, %s42
      %p56 = scmp.eq.s32.totalorder %s20, 1
      %p57 = por %p55, %p56
      %p59 = scmp.ne.s32.totalorder %s42, %s58
      %p60 = scmp.eq.s32.totalorder %s20, 0
      %p61 = por %p59, %p60
      %s63 = sadd.s32 %s62, 1
      %p66 = scmp.eq.s32.totalorder %s14, 1
      %p67 = scmp.ne.s32.totalorder %s62, %s64
      %p68 = scmp.eq.s32.totalorder %s14, 0
      %p69 = por %p67, %p68
      %p70 = scmp.ne.s32.totalorder %s62, %s64
      %p71 = scmp.eq.s32.totalorder %s19, 1
      %p72 = por %p70, %p71
      %p73 = scmp.ne.s32.totalorder %s64, %s65
      %p74 = scmp.eq.s32.totalorder %s19, 0
      %p75 = por %p73, %p74
      %p76 = scmp.ne.s32.totalorder %s64, %s65
      %p77 = scmp.eq.s32.totalorder %s20, 1
      %p78 = por %p76, %p77
      %p80 = scmp.ne.s32.totalorder %s65, %s79
      %p81 = scmp.eq.s32.totalorder %s20, 0
      %p82 = por %p80, %p81
      %s84 = sadd.s32 %s83, 1
      %p87 = scmp.eq.s32.totalorder %s14, 1
      %p88 = scmp.ne.s32.totalorder %s83, %s85
      %p89 = scmp.eq.s32.totalorder %s14, 0
      %p90 = por %p88, %p89
      %p91 = scmp.ne.s32.totalorder %s83, %s85
      %p92 = scmp.eq.s32.totalorder %s19, 1
      %p93 = por %p91, %p92
      %p94 = scmp.ne.s32.totalorder %s85, %s86
      %p95 = scmp.eq.s32.totalorder %s19, 0
      %p96 = por %p94, %p95
      %p97 = scmp.ne.s32.totalorder %s85, %s86
      %p98 = scmp.eq.s32.totalorder %s20, 1
      %p99 = por %p97, %p98
      %p101 = scmp.ne.s32.totalorder %s86, %s100
      %p102 = scmp.eq.s32.totalorder %s20, 0
      %p103 = por %p101, %p102
      %s105 = sadd.s32 %s104, 1
      %p108 = scmp.eq.s32.totalorder %s14, 1
      %p109 = scmp.ne.s32.totalorder %s104, %s106
      %p110 = scmp.eq.s32.totalorder %s14, 0
      %p111 = por %p109, %p110
      %p112 = scmp.ne.s32.totalorder %s104, %s106
      %p113 = scmp.eq.s32.totalorder %s19, 1
      %p114 = por %p112, %p113
      %p115 = scmp.ne.s32.totalorder %s106, %s107
      %p116 = scmp.eq.s32.totalorder %s19, 0
      %p117 = por %p115, %p116
      %p118 = scmp.ne.s32.totalorder %s106, %s107
      %p119 = scmp.eq.s32.totalorder %s20, 1
      %p120 = por %p118, %p119
      %p122 = scmp.ne.s32.totalorder %s107, %s121
      %p123 = scmp.eq.s32.totalorder %s20, 0
      %p124 = por %p122, %p123
      %s126 = sadd.s32 %s125, 1
      %p129 = scmp.eq.s32.totalorder %s14, 1
      %p130 = scmp.ne.s32.totalorder %s125, %s127
      %p131 = scmp.eq.s32.totalorder %s14, 0
      %p132 = por %p130, %p131
      %p133 = scmp.ne.s32.totalorder %s125, %s127
      %p134 = scmp.eq.s32.totalorder %s19, 1
      %p135 = por %p133, %p134
      %p136 = scmp.ne.s32.totalorder %s127, %s128
      %p137 = scmp.eq.s32.totalorder %s19, 0
      %p138 = por %p136, %p137
      %p139 = scmp.ne.s32.totalorder %s127, %s128
      %p140 = scmp.eq.s32.totalorder %s20, 1
      %p141 = por %p139, %p140
      %p143 = scmp.ne.s32.totalorder %s128, %s142
      %p144 = scmp.eq.s32.totalorder %s20, 0
      %p145 = por %p143, %p144
      %s146 = ssub.s32 %s21, %s33
      %s147 = ssub.s32 %s22, %s29
      %s148 = sor.u32 %s146, %s147
      %p149 = scmp.eq.s32.totalorder %s148, 0
      %s151 = sadd.s32 %s150, 1
      %s152 = scalar_select %p149, %s150, %s151
      %p155 = pneg %p149
      %p156 = scmp.eq.s32.totalorder %s14, 1
      %p157 = por %p155, %p156
      %p158 = scmp.ne.s32.totalorder %s150, %s153
      %p159 = scmp.eq.s32.totalorder %s14, 0
      %p160 = por %p158, %p159
      %p161 = scmp.ne.s32.totalorder %s150, %s153
      %p162 = scmp.eq.s32.totalorder %s19, 1
      %p163 = por %p161, %p162
      %p164 = scmp.ne.s32.totalorder %s153, %s154
      %p165 = scmp.eq.s32.totalorder %s19, 0
      %p166 = por %p164, %p165
      %p167 = scmp.ne.s32.totalorder %s153, %s154
      %p168 = scmp.eq.s32.totalorder %s20, 1
      %p169 = por %p167, %p168
      %p171 = scmp.ne.s32.totalorder %s154, %s170
      %p172 = scmp.eq.s32.totalorder %s20, 0
      %p173 = por %p171, %p172
      %p174 = scmp.le.s32.totalorder 1, %s14
      %p175 = scmp.lt.s32.totalorder %s14, 3
      %p176 = pnand %p174, %p175
      %p177 = pneg %p176
      // Predicated region
      $region9: #{tpu_custom_call.1} parent=5 // pred_check
        _
      $region10: #{tpu_custom_call.1} parent=5 // pred_check_branch
        %179 = sbr.rel (%p176) target = $region12
      $region11: #{tpu_custom_call.1} parent=5 // pred_region
        %s180 = ssub.s32 %s14, 1
        // Predicated region
        $region13: #{tpu_custom_call.1} parent=11 // pred_check
          %p181 = pneg %p75
        $region14: #{tpu_custom_call.1} parent=11 // pred_check_branch
          %183 = sbr.rel (%p181) target = $region16
        $region15: #{tpu_custom_call.1} parent=11 // pred_region
          _
        $region16: #{tpu_custom_call.1} parent=11 // pred_fallthru
          _
        // Predicated region
        $region17: #{tpu_custom_call.1} parent=11 // pred_check
          %p184 = pneg %p96
        $region18: #{tpu_custom_call.1} parent=11 // pred_check_branch
          %186 = sbr.rel (%p184) target = $region20
        $region19: #{tpu_custom_call.1} parent=11 // pred_region
          _
        $region20: #{tpu_custom_call.1} parent=11 // pred_fallthru
          _
        // Predicated region
        $region21: #{tpu_custom_call.1} parent=11 // pred_check
          %p187 = pneg %p117
        $region22: #{tpu_custom_call.1} parent=11 // pred_check_branch
          %189 = sbr.rel (%p187) target = $region24
        $region23: #{tpu_custom_call.1} parent=11 // pred_region
          _
        $region24: #{tpu_custom_call.1} parent=11 // pred_fallthru
          _
        // Predicated region
        $region25: #{tpu_custom_call.1} parent=11 // pred_check
          %p190 = pneg %p138
        $region26: #{tpu_custom_call.1} parent=11 // pred_check_branch
          %192 = sbr.rel (%p190) target = $region28
        $region27: #{tpu_custom_call.1} parent=11 // pred_region
          _
        $region28: #{tpu_custom_call.1} parent=11 // pred_fallthru
          _
      $region12: #{tpu_custom_call.1} parent=5 // pred_fallthru
        _
      %p193 = scmp.lt.s32.totalorder %s14, 2
      // Predicated region
      $region29: #{tpu_custom_call.1} parent=5 // pred_check
        %p194 = pneg %p193
      $region30: #{tpu_custom_call.1} parent=5 // pred_check_branch
        %196 = sbr.rel (%p194) target = $region32
      $region31: #{tpu_custom_call.1} parent=5 // pred_region
        // Predicated region
        $region33: #{tpu_custom_call.1} parent=31 // pred_check
          %p197 = pneg %p48
        $region34: #{tpu_custom_call.1} parent=31 // pred_check_branch
          %199 = sbr.rel (%p197) target = $region36
        $region35: #{tpu_custom_call.1} parent=31 // pred_region
          %s200 = smul.u32 2, %s22
          %p201 = scmp.lt.s32.totalorder %s21, 1
          %s202 = scalar_select %p201, %s21, 1
          %p203 = scmp.lt.s32.totalorder %s200, 1
          %s204 = scalar_select %p203, %s200, 1
          %s205 = smul.addr %s202, 2
          %s206 = sadd.s32 %s204, %s205
          %s207 = smul.addr %s206, 4
          %s208 = scalar_lea.vmem %s0, %s207
          %s209 = smul.u32 2, %s22
        $region36: #{tpu_custom_call.1} parent=31 // pred_fallthru
          _
      $region32: #{tpu_custom_call.1} parent=5 // pred_fallthru
        _
      %p210 = scmp.le.s32.totalorder 1, %s14
      %p211 = scmp.lt.s32.totalorder %s14, 3
      %p212 = pnand %p210, %p211
      %p213 = pneg %p212
      // Predicated region
      $region37: #{tpu_custom_call.1} parent=5 // pred_check
        _
      $region38: #{tpu_custom_call.1} parent=5 // pred_check_branch
        %215 = sbr.rel (%p212) target = $region40
      $region39: #{tpu_custom_call.1} parent=5 // pred_region
        %s216 = ssub.s32 %s14, 1
        %s217 = smul.u32 2, %s24
        %p218 = scmp.lt.s32.totalorder %s23, 1
        %s219 = scalar_select %p218, %s23, 1
        %p220 = scmp.lt.s32.totalorder %s217, 1
        %s221 = scalar_select %p220, %s217, 1
        %s222 = smul.addr %s219, 2
        %s223 = sadd.s32 %s221, %s222
        %s224 = smul.addr %s223, 4
        %s225 = scalar_lea.vmem %s0, %s224
        %p226 = pneg %p54
        %p227 = pneg %p51
        %p228 = pneg %p75
        %p229 = pneg %p72
        %p230 = pneg %p96
        %p231 = pneg %p93
        %p232 = pneg %p117
        %p233 = pneg %p114
        %p234 = pneg %p138
        %p235 = pneg %p135
        %p236 = pneg %p166
        %p237 = pneg %p163
        %s238 = sand.u32 %s153, 1
        %s239 = scalar_lea.sflag [#allocation3], %s238
        %s240 = sand.u32 %s153, 1
        %s241 = smul.addr %s240, 16
        %s242 = scalar_lea.vmem [#allocation2], %s241
        %s243 = smul.u32 2, %s24
        %p244 = scmp.lt.s32.totalorder %s23, 1
        %s245 = scalar_select %p244, %s23, 1
        %p246 = scmp.lt.s32.totalorder %s243, 1
        %s247 = scalar_select %p246, %s243, 1
        %s248 = smul.addr %s245, 2
        %s249 = sadd.s32 %s247, %s248
        %s250 = smul.addr %s249, 4
        %s251 = scalar_lea.vmem %s0, %s250
        %s252 = smul.u32 2, %s24
        %s253 = smul.u32 2, %s24
        %v254 = vld [vmem:[%s251] sm:$0xff]
        %v255 = vld [vmem:[%s1] sm:$0xf]
        %v256 = vld [vmem:[%s2] sm:$0xf]
        %258 = vset.pattern.permute.xlu0 0
        %259 = vperm.xlu0 %258, %v256
        %v260 = vpop.permute.xlu0 %259
        %v263 = vcombine.high %v254, %v254
        %vm264 = vcmask 31744
        %v266 = vsel %vm264, %v255, 0
        %vm268 = vcmask 1043456
        %v269 = vsel %vm268, %v254, 0
        %v271 = vsel %vm268, %v263, 0
        %273 = vmatprep.subr.mxu0 0.0
        %274 = vmatpush1.msra.mxu0 0.0
        %275 = vmatprep.subr.mxu0 0.0
        %276 = vmatpush1.msra.mxu0 0.0
        %277 = vmatprep.subr.mxu0 0.0
        %278 = vmatpush1.msra.mxu0 0.0
        %279 = vmatprep.subr.mxu0 0.0
        %280 = vmatpush1.msra.mxu0 0.0
        %281 = vmatprep.subr.mxu0 0.0
        %282 = vmatpush1.msra.mxu0 0.0
        %283 = vmatprep.subr.mxu0 0.0
        %284 = vmatpush1.msra.mxu0 0.0
        %285 = vmatprep.subr.mxu0 0.0
        %286 = vmatpush1.msra.mxu0 0.0
        %287 = vmatprep.subr.mxu0 0.0
        %288 = vmatpush1.msra.mxu0 0.0
        %289 = vmatprep.subr.mxu0 0.0
        %290 = vmatpush1.msra.mxu0 0.0
        %291 = vmatprep.subr.mxu0 0.0
        %292 = vmatpush1.msra.mxu0 0.0
        %293 = vmatprep.subr.mxu0 0.0
        %294 = vmatpush1.msra.mxu0 0.0
        %295 = vmatprep.subr.mxu0 0.0
        %296 = vmatpush1.msra.mxu0 0.0
        %297 = vmatprep.subr.mxu0 0.0
        %298 = vmatpush1.msra.mxu0 0.0
        %299 = vmatprep.subr.mxu0 0.0
        %300 = vmatpush1.msra.mxu0 0.0
        %301 = vmatprep.subr.mxu0 0.0
        %302 = vmatpush1.msra.mxu0 0.0
        %303 = vmatprep.subr.mxu0 %v271
        %304 = vmatpush1.msra.mxu0 %v269
        %305 = vmatprep.subr.mxu0 0.0
        %306 = vmatpush2.msra.mxu0 0.0
        %307 = vmatprep.subr.mxu0 0.0
        %308 = vmatpush2.msra.mxu0 0.0
        %309 = vmatprep.subr.mxu0 0.0
        %310 = vmatpush2.msra.mxu0 0.0
        %311 = vmatprep.subr.mxu0 0.0
        %312 = vmatpush2.msra.mxu0 0.0
        %313 = vmatprep.subr.mxu0 0.0
        %314 = vmatpush2.msra.mxu0 0.0
        %315 = vmatprep.subr.mxu0 0.0
        %316 = vmatpush2.msra.mxu0 0.0
        %317 = vmatprep.subr.mxu0 0.0
        %318 = vmatpush2.msra.mxu0 0.0
        %319 = vmatprep.subr.mxu0 0.0
        %320 = vmatpush2.msra.mxu0 0.0
        %321 = vmatprep.subr.mxu0 0.0
        %322 = vmatpush2.msra.mxu0 0.0
        %323 = vmatprep.subr.mxu0 0.0
        %324 = vmatpush2.msra.mxu0 0.0
        %325 = vmatprep.subr.mxu0 0.0
        %326 = vmatpush2.msra.mxu0 0.0
        %327 = vmatprep.subr.mxu0 0.0
        %328 = vmatpush2.msra.mxu0 0.0
        %329 = vmatprep.subr.mxu0 0.0
        %330 = vmatpush2.msra.mxu0 0.0
        %331 = vmatprep.subr.mxu0 0.0
        %332 = vmatpush2.msra.mxu0 0.0
        %333 = vmatprep.subr.mxu0 0.0
        %334 = vmatpush2.msra.mxu0 0.0
        %335 = vmatprep.subr.mxu0 0.0
        %336 = vmatpush2.msra.mxu0 0.0
        %337 = vmatprep.mubr.f32.mxu0 0.0
        %338 = vmatmul.mubr.f32.gmra.mxu0 %v266
        %v339 = vpop.f32.mrf.mxu0
        %v340 = vadd.f32 %v260, %v339
        %v341 = vpop.f32.mrf.mxu0
        %v342 = vadd.f32 %v260, %v341
        %343 = vdwg.mxu0
        %v344 = vmax.f32 %v340, 0.0
        %v345 = vmax.f32 %v342, 0.0
        %v346 = vld [vmem:[%s3] sm:$0xff]
        %v347 = vld [vmem:[%s4] sm:$0xff]
        %349 = vset.pattern.permute.xlu0 0
        %350 = vperm.xlu0 %349, %v347
        %v351 = vpop.permute.xlu0 %350
        %v354 = vsel %vm264, %v346, 0
        %v357 = vsel %vm268, %v344, 0
        %v360 = vsel %vm268, %v345, 0
        %362 = vmatprep.subr.mxu0 0.0
        %363 = vmatpush1.msra.mxu0 0.0
        %364 = vmatprep.subr.mxu0 0.0
        %365 = vmatpush1.msra.mxu0 0.0
        %366 = vmatprep.subr.mxu0 0.0
        %367 = vmatpush1.msra.mxu0 0.0
        %368 = vmatprep.subr.mxu0 0.0
        %369 = vmatpush1.msra.mxu0 0.0
        %370 = vmatprep.subr.mxu0 0.0
        %371 = vmatpush1.msra.mxu0 0.0
        %372 = vmatprep.subr.mxu0 0.0
        %373 = vmatpush1.msra.mxu0 0.0
        %374 = vmatprep.subr.mxu0 0.0
        %375 = vmatpush1.msra.mxu0 0.0
        %376 = vmatprep.subr.mxu0 0.0
        %377 = vmatpush1.msra.mxu0 0.0
        %378 = vmatprep.subr.mxu0 0.0
        %379 = vmatpush1.msra.mxu0 0.0
        %380 = vmatprep.subr.mxu0 0.0
        %381 = vmatpush1.msra.mxu0 0.0
        %382 = vmatprep.subr.mxu0 0.0
        %383 = vmatpush1.msra.mxu0 0.0
        %384 = vmatprep.subr.mxu0 0.0
        %385 = vmatpush1.msra.mxu0 0.0
        %386 = vmatprep.subr.mxu0 0.0
        %387 = vmatpush1.msra.mxu0 0.0
        %388 = vmatprep.subr.mxu0 0.0
        %389 = vmatpush1.msra.mxu0 0.0
        %390 = vmatprep.subr.mxu0 0.0
        %391 = vmatpush1.msra.mxu0 0.0
        %392 = vmatprep.subr.mxu0 %v360
        %393 = vmatpush1.msra.mxu0 %v357
        %394 = vmatprep.subr.mxu0 0.0
        %395 = vmatpush2.msra.mxu0 0.0
        %396 = vmatprep.subr.mxu0 0.0
        %397 = vmatpush2.msra.mxu0 0.0
        %398 = vmatprep.subr.mxu0 0.0
        %399 = vmatpush2.msra.mxu0 0.0
        %400 = vmatprep.subr.mxu0 0.0
        %401 = vmatpush2.msra.mxu0 0.0
        %402 = vmatprep.subr.mxu0 0.0
        %403 = vmatpush2.msra.mxu0 0.0
        %404 = vmatprep.subr.mxu0 0.0
        %405 = vmatpush2.msra.mxu0 0.0
        %406 = vmatprep.subr.mxu0 0.0
        %407 = vmatpush2.msra.mxu0 0.0
        %408 = vmatprep.subr.mxu0 0.0
        %409 = vmatpush2.msra.mxu0 0.0
        %410 = vmatprep.subr.mxu0 0.0
        %411 = vmatpush2.msra.mxu0 0.0
        %412 = vmatprep.subr.mxu0 0.0
        %413 = vmatpush2.msra.mxu0 0.0
        %414 = vmatprep.subr.mxu0 0.0
        %415 = vmatpush2.msra.mxu0 0.0
        %416 = vmatprep.subr.mxu0 0.0
        %417 = vmatpush2.msra.mxu0 0.0
        %418 = vmatprep.subr.mxu0 0.0
        %419 = vmatpush2.msra.mxu0 0.0
        %420 = vmatprep.subr.mxu0 0.0
        %421 = vmatpush2.msra.mxu0 0.0
        %422 = vmatprep.subr.mxu0 0.0
        %423 = vmatpush2.msra.mxu0 0.0
        %424 = vmatprep.subr.mxu0 0.0
        %425 = vmatpush2.msra.mxu0 0.0
        %426 = vmatprep.mubr.f32.mxu0 0.0
        %427 = vmatmul.mubr.f32.gmra.mxu0 %v354
        %v428 = vpop.f32.mrf.mxu0
        %v429 = vadd.f32 %v351, %v428
        %v430 = vpop.f32.mrf.mxu0
        %v431 = vadd.f32 %v351, %v430
        %432 = vdwg.mxu0
        %433 = vst [vmem:[%s242] sm:$0xff] %v429
        %434 = vst [vmem:[%s242 + $0x8] sm:$0xff] %v431
        %s435 = sand.u32 %s153, 1
        %s436 = scalar_lea.sflag [#allocation3], %s435
        %s437 = sand.u32 %s153, 1
        %s438 = smul.addr %s437, 16
        %s439 = scalar_lea.vmem [#allocation2], %s438
        // Predicated region
        $region41: #{tpu_custom_call.1} parent=39 // pred_check
          %p440 = pneg %p163
        $region42: #{tpu_custom_call.1} parent=39 // pred_check_branch
          %442 = sbr.rel (%p440) target = $region44
        $region43: #{tpu_custom_call.1} parent=39 // pred_region
          %s443 = smul.u32 2, %s24
          %s445 = ssub.s32 256, 256
          %446 = vsyncadd %s436, %s445
          %s447 = smul.addr %s23, 2
          %s448 = sadd.s32 %s443, %s447
          %s449 = smul.addr %s448, 128
          %s450 = scalar_lea.hbm %s5, %s449
          %s452 = sshll.u32 %s439, 4
          %s453 = int_to_ptr.vmem [resolvable:$true] %s452
          %455 = dma.vmem_to_hbm [thread:$0]  %s453, 256, %s450, %s436
        $region44: #{tpu_custom_call.1} parent=39 // pred_fallthru
          _
      $region40: #{tpu_custom_call.1} parent=5 // pred_fallthru
        _
      %p456 = scmp.le.s32.totalorder 2, %s14
      // Predicated region
      $region45: #{tpu_custom_call.1} parent=5 // pred_check
        %p457 = pneg %p456
      $region46: #{tpu_custom_call.1} parent=5 // pred_check_branch
        %459 = sbr.rel (%p457) target = $region48
      $region47: #{tpu_custom_call.1} parent=5 // pred_region
        %s460 = ssub.s32 %s14, 2
        // Predicated region
        $region49: #{tpu_custom_call.1} parent=47 // pred_check
          %p461 = pneg %p169
        $region50: #{tpu_custom_call.1} parent=47 // pred_check_branch
          %463 = sbr.rel (%p461) target = $region52
        $region51: #{tpu_custom_call.1} parent=47 // pred_region
          %s464 = sand.u32 %s154, 1
          %s465 = scalar_lea.sflag [#allocation3], %s464
          %s466 = sand.u32 %s154, 1
          %s467 = smul.addr %s466, 16
          %s468 = scalar_lea.vmem [#allocation2], %s467
          %469 = dma.done %s465, 256
        $region52: #{tpu_custom_call.1} parent=47 // pred_fallthru
          _
      $region48: #{tpu_custom_call.1} parent=5 // pred_fallthru
        _
    $region6: #{tpu_custom_call.1} parent=1 // loop_footer
      %s18 = sadd.s32 1, %s14
    $region7: #{tpu_custom_call.1} parent=1 // loop_footer_branch
      %13 = sbr.rel target = $region3
    $region8: #{tpu_custom_call.1} parent=1 // loop_exit
      _
    %470 = vsyncpa [#allocation3], 1
    %s471 = scalar_lea.sflag [#allocation3], 1
    %472 = vsyncpa %s471, 1

</llo_original>
